<compile_context>
chip_gen: v7x
topology: tpu7x:2x2x1
jax: 0.10.0
libtpu: 0.0.40
codegen_flags: <defaults>
</compile_context>

<pallas_src>
import jax
import jax.numpy as jnp
from jax.experimental import pallas as pl
from jax.experimental.pallas import tpu as pltpu

BN_EPS = 1e-5
GRAVITY_TERM = -0.5 * 9.8  # constant quadratic coefficient for the y-track


def _physical_forward_kernel(x_ref, wt_ref, gb_ref, proj_ref, grav_ref, o_ref):
    # ---- Linear(in_dim, 4), bias omitted (cancels under batch-mean subtract)
    x = x_ref[...]                                             # (B, D) f32
    p = jnp.dot(x, wt_ref[...], preferred_element_type=jnp.float32)  # (B, 4)

    # ---- BatchNorm1d(4), training-mode batch statistics (biased variance) --
    mean = jnp.mean(p, axis=0, keepdims=True)                  # (1, 4)
    diff = p - mean
    var = jnp.mean(diff * diff, axis=0, keepdims=True)         # (1, 4)
    gamma = gb_ref[0:1, :]                                     # (1, 4)
    beta = gb_ref[1:2, :]                                      # (1, 4)
    p = diff * jax.lax.rsqrt(var + BN_EPS) * gamma + beta      # (B, 4)

    # ---- predict_locations as one lane-dense matmul ------------------------
    # proj is the (4, 2*pre) block-diagonal basis:
    #   rows 0,1 -> [1, t] for the x half; rows 2,3 -> [1, t] for the y half.
    # grav is the constant (1, 2*pre) gravity row (-0.5*9.8*t^2 in the y half).
    locs = jnp.dot(p, proj_ref[...], preferred_element_type=jnp.float32)
    o_ref[...] = locs + grav_ref[...]                          # single store


def physical_forward(x, weight, bias, gamma, beta, out_dim,
                     in_frames_num=3, fps=30.0):
    """x: (B, in_dim) f32; weight: (4, in_dim); bias/gamma/beta: (4,).

    `bias` is accepted for API parity with the PyTorch module but is not fed
    to the kernel: training-mode BatchNorm removes any per-channel constant
    offset exactly, so the result is bit-for-bit invariant to it.
    """
    B, in_dim = x.shape
    pre = out_dim // 2

    # --- data-independent setup glue (constant-folded by XLA) ---------------
    t_vec = jnp.arange(in_frames_num, pre + in_frames_num,
                       dtype=jnp.float32) / jnp.float32(fps)          # (pre,)
    ones = jnp.ones((pre,), jnp.float32)
    zeros = jnp.zeros((pre,), jnp.float32)
    # (4, 2*pre) block-diagonal projection basis.
    proj = jnp.stack([
        jnp.concatenate([ones, zeros]),     # p0 -> x intercept
        jnp.concatenate([t_vec, zeros]),    # p1 -> x velocity
        jnp.concatenate([zeros, ones]),     # p2 -> y intercept
        jnp.concatenate([zeros, t_vec]),    # p3 -> y velocity
    ], axis=0)
    # (1, 2*pre) constant gravity row (only affects the y half).
    grav = jnp.concatenate(
        [zeros, jnp.float32(GRAVITY_TERM) * t_vec * t_vec]).reshape(1, 2 * pre)

    wt = weight.T.astype(jnp.float32)                                  # (D, 4)
    gb = jnp.stack([gamma.astype(jnp.float32),
                    beta.astype(jnp.float32)], axis=0)                 # (2, 4)

    vmem = pl.BlockSpec(memory_space=pltpu.MemorySpace.VMEM)
    out = pl.pallas_call(
        _physical_forward_kernel,
        out_shape=jax.ShapeDtypeStruct((B, 2 * pre), jnp.float32),
        in_specs=[vmem] * 5,
        out_specs=vmem,
    )(x.astype(jnp.float32), wt, gb, proj, grav)
    return out


def _reference(x, weight, bias, gamma, beta, out_dim,
               in_frames_num=3, fps=30.0):
    """Pure-JAX reference matching the PyTorch module (bias included)."""
    pre = out_dim // 2
    p = x @ weight.T + bias
    mean = p.mean(axis=0, keepdims=True)
    var = ((p - mean) ** 2).mean(axis=0, keepdims=True)
    p = (p - mean) / jnp.sqrt(var + BN_EPS) * gamma + beta
    t = jnp.arange(in_frames_num, pre + in_frames_num, dtype=jnp.float32) / fps
    tmat = jnp.stack([jnp.ones_like(t), t, t * t], axis=0)
    xp = jnp.concatenate([p[:, :2], jnp.zeros((p.shape[0], 1))], axis=1)
    yp = jnp.concatenate([p[:, 2:], jnp.full((p.shape[0], 1), GRAVITY_TERM)],
                         axis=1)
    return jnp.concatenate([xp @ tmat, yp @ tmat], axis=1)


if __name__ == "__main__":
    B, IN_DIM, OUT_DIM = 8, 16, 30  # out_dim even -> pre_frames_num = 15

    key = jax.random.PRNGKey(0)
    kx, kw, kb = jax.random.split(key, 3)
    x = jax.random.normal(kx, (B, IN_DIM), dtype=jnp.float32)

    # deterministic Linear(in_dim, 4) init (PyTorch-style uniform bound)
    bound = 1.0 / (IN_DIM ** 0.5)
    weight = jax.random.uniform(kw, (4, IN_DIM), jnp.float32, -bound, bound)
    bias = jax.random.uniform(kb, (4,), jnp.float32, -bound, bound)
    # BatchNorm1d(4) affine params at default init
    gamma = jnp.ones((4,), jnp.float32)
    beta = jnp.zeros((4,), jnp.float32)

    out = physical_forward(x, weight, bias, gamma, beta, OUT_DIM)
    out = jax.block_until_ready(out)

    ref = _reference(x, weight, bias, gamma, beta, OUT_DIM)
    assert out.shape == (B, OUT_DIM)
    assert jnp.allclose(out, ref, atol=1e-4, rtol=1e-4)
    print("KERNEL_OK")
</pallas_src>

<mosaic_0001>
module attributes {stable_mosaic.version = 11 : i64} {
  func.func @_physical_forward_kernel(%arg0: memref<8x16xf32, #tpu.memory_space<vmem>>, %arg1: memref<16x4xf32, #tpu.memory_space<vmem>>, %arg2: memref<2x4xf32, #tpu.memory_space<vmem>>, %arg3: memref<4x30xf32, #tpu.memory_space<vmem>>, %arg4: memref<1x30xf32, #tpu.memory_space<vmem>>, %arg5: memref<8x30xf32, #tpu.memory_space<vmem>>) attributes {dimension_semantics = [], scalar_prefetch = 0 : i64, scratch_operands = 0 : i64, tpu.core_type = #tpu.core_type<tc>} {
    %c0 = arith.constant 0 : index
    %c0_0 = arith.constant 0 : index
    %0 = vector.load %arg0[%c0, %c0_0] : memref<8x16xf32, #tpu.memory_space<vmem>>, vector<8x16xf32>
    %c0_1 = arith.constant 0 : index
    %c0_2 = arith.constant 0 : index
    %1 = vector.load %arg1[%c0_1, %c0_2] : memref<16x4xf32, #tpu.memory_space<vmem>>, vector<16x4xf32>
    %cst = arith.constant dense<0.000000e+00> : vector<8x4xf32>
    %2 = tpu.matmul %0, %1, %cst {dimension_numbers = #tpu.dot_dimension_numbers<[1], [0], [0], [1], [0, 0, 1, 1], [], []>} : vector<8x16xf32>, vector<16x4xf32>, vector<8x4xf32> -> vector<8x4xf32>
    %cst_3 = arith.constant dense<0.000000e+00> : vector<4xf32>
    %3 = vector.multi_reduction <add>, %2, %cst_3 [0] : vector<8x4xf32> to vector<4xf32>
    %4 = vector.shape_cast %3 : vector<4xf32> to vector<1x4xf32>
    %cst_4 = arith.constant 8.000000e+00 : f32
    %5 = vector.broadcast %cst_4 : f32 to vector<1x4xf32>
    %6 = arith.divf %4, %5 : vector<1x4xf32>
    %7 = vector.broadcast %6 : vector<1x4xf32> to vector<8x4xf32>
    %8 = arith.subf %2, %7 : vector<8x4xf32>
    %9 = arith.mulf %8, %8 : vector<8x4xf32>
    %cst_5 = arith.constant dense<0.000000e+00> : vector<4xf32>
    %10 = vector.multi_reduction <add>, %9, %cst_5 [0] : vector<8x4xf32> to vector<4xf32>
    %11 = vector.shape_cast %10 : vector<4xf32> to vector<1x4xf32>
    %cst_6 = arith.constant 8.000000e+00 : f32
    %12 = vector.broadcast %cst_6 : f32 to vector<1x4xf32>
    %13 = arith.divf %11, %12 : vector<1x4xf32>
    %c0_7 = arith.constant 0 : index
    %c0_8 = arith.constant 0 : index
    %14 = vector.load %arg2[%c0_7, %c0_8] : memref<2x4xf32, #tpu.memory_space<vmem>>, vector<1x4xf32>
    %c1 = arith.constant 1 : index
    %c0_9 = arith.constant 0 : index
    %15 = vector.load %arg2[%c1, %c0_9] : memref<2x4xf32, #tpu.memory_space<vmem>>, vector<1x4xf32>
    %cst_10 = arith.constant 9.99999974E-6 : f32
    %16 = vector.broadcast %cst_10 : f32 to vector<1x4xf32>
    %17 = arith.addf %13, %16 : vector<1x4xf32>
    %18 = math.rsqrt %17 : vector<1x4xf32>
    %19 = vector.broadcast %18 : vector<1x4xf32> to vector<8x4xf32>
    %20 = arith.mulf %8, %19 : vector<8x4xf32>
    %21 = vector.broadcast %14 : vector<1x4xf32> to vector<8x4xf32>
    %22 = arith.mulf %20, %21 : vector<8x4xf32>
    %23 = vector.broadcast %15 : vector<1x4xf32> to vector<8x4xf32>
    %24 = arith.addf %22, %23 : vector<8x4xf32>
    %c0_11 = arith.constant 0 : index
    %c0_12 = arith.constant 0 : index
    %25 = vector.load %arg3[%c0_11, %c0_12] : memref<4x30xf32, #tpu.memory_space<vmem>>, vector<4x30xf32>
    %cst_13 = arith.constant dense<0.000000e+00> : vector<8x30xf32>
    %26 = tpu.matmul %24, %25, %cst_13 {dimension_numbers = #tpu.dot_dimension_numbers<[1], [0], [0], [1], [0, 0, 1, 1], [], []>} : vector<8x4xf32>, vector<4x30xf32>, vector<8x30xf32> -> vector<8x30xf32>
    %c0_14 = arith.constant 0 : index
    %c0_15 = arith.constant 0 : index
    %27 = vector.load %arg4[%c0_14, %c0_15] : memref<1x30xf32, #tpu.memory_space<vmem>>, vector<1x30xf32>
    %28 = vector.broadcast %27 : vector<1x30xf32> to vector<8x30xf32>
    %29 = arith.addf %26, %28 : vector<8x30xf32>
    %c0_16 = arith.constant 0 : index
    %c0_17 = arith.constant 0 : index
    %30 = vector.load %arg5[%c0_16, %c0_17] : memref<8x30xf32, #tpu.memory_space<vmem>>, vector<8x30xf32>
    tpu.vector_store %arg5[%c0_16, %c0_17], %29 {strides = array<i32>} : memref<8x30xf32, #tpu.memory_space<vmem>>, vector<8x30xf32>,
    return
  }
}

</mosaic_0001>

<llo_original>
// kernel: tpu_custom_call.1
$region0: #{tpu_custom_call.1}
  #allocation0 [shape = 'u32[]', space=smem, size = 0x4, offset = 0x4, fixed_abs, tag = 'smem constant byte address 0x4 - core index']
  #allocation1 [shape = 'u32[144,128]{1,0:T(1,128)}', space=vmem, size = 0x12000, scoped, tag = 'internal scratch']
  %s0 = inlined_call_operand.vmem [shape: f32[8,16], index: 0, kind: input, shape index: {}]
  %s1 = inlined_call_operand.vmem [shape: f32[16,4], index: 1, kind: input, shape index: {}]
  %s2 = inlined_call_operand.vmem [shape: f32[2,4], index: 2, kind: input, shape index: {}]
  %s3 = inlined_call_operand.vmem [shape: f32[4,30], index: 3, kind: input, shape index: {}]
  %s4 = inlined_call_operand.vmem [shape: f32[1,30], index: 4, kind: input, shape index: {}]
  %s5 = inlined_call_operand.hbm [shape: f32[8,30], index: 5, kind: output, shape index: {}]
  %s6 = sld [smem:[#allocation0]]
  $region30: #{tpu_custom_call.1} parent=0
    _
  %s8 = ssub.s32 1, %s6
  %s9 = scalar_select 0, %s8, %s6
  $region1: #{tpu_custom_call.1} parent=0
    #allocation2 [shape = 'u8[4096]{0}', space=vmem, size = 0x1000, scoped, tag = 'output window, operand 0, single buffered']
    #allocation3 [shape = 's32[1]{0}', space=sflag, size = 0x4, scoped, tag = 'scoped memory for tpu_custom_call.1']
    %10 = vsyncpa [#allocation3], 0
    // Predicated region
    $region2: #{tpu_custom_call.1} parent=1 // pred_check
      _
    $region3: #{tpu_custom_call.1} parent=1 // pred_check_branch
      %12 = sbr.rel (0) target = $region5
    $region4: #{tpu_custom_call.1} parent=1 // pred_region
      _
    $region5: #{tpu_custom_call.1} parent=1 // pred_fallthru
      _
    // Predicated region
    $region6: #{tpu_custom_call.1} parent=1 // pred_check
      _
    $region7: #{tpu_custom_call.1} parent=1 // pred_check_branch
      %14 = sbr.rel (0) target = $region9
    $region8: #{tpu_custom_call.1} parent=1 // pred_region
      _
    $region9: #{tpu_custom_call.1} parent=1 // pred_fallthru
      _
    // Predicated region
    $region10: #{tpu_custom_call.1} parent=1 // pred_check
      _
    $region11: #{tpu_custom_call.1} parent=1 // pred_check_branch
      %16 = sbr.rel (0) target = $region13
    $region12: #{tpu_custom_call.1} parent=1 // pred_region
      _
    $region13: #{tpu_custom_call.1} parent=1 // pred_fallthru
      _
    // Predicated region
    $region14: #{tpu_custom_call.1} parent=1 // pred_check
      _
    $region15: #{tpu_custom_call.1} parent=1 // pred_check_branch
      %18 = sbr.rel (0) target = $region17
    $region16: #{tpu_custom_call.1} parent=1 // pred_region
      _
    $region17: #{tpu_custom_call.1} parent=1 // pred_fallthru
      _
    // Predicated region
    $region18: #{tpu_custom_call.1} parent=1 // pred_check
      _
    $region19: #{tpu_custom_call.1} parent=1 // pred_check_branch
      %20 = sbr.rel (0) target = $region21
    $region20: #{tpu_custom_call.1} parent=1 // pred_region
      _
    $region21: #{tpu_custom_call.1} parent=1 // pred_fallthru
      _
    %v21 = vld [vmem:[%s0] sm:$0xff]
    %v22 = vld [vmem:[%s1] sm:$0xff]
    %v23 = vld [vmem:[%s1 + $0x8] sm:$0xff]
    %vm24 = vcmask 130048
    %v26 = vsel %vm24, %v21, 0
    %28 = vmatprep.subr.mxu0 0.0
    %29 = vmatpush1.msra.mxu0 %v22
    %30 = vmatprep.subr.mxu0 0.0
    %31 = vmatpush1.msra.mxu0 %v23
    %32 = vmatprep.subr.mxu0 0.0
    %33 = vmatpush1.msra.mxu0 0.0
    %34 = vmatprep.subr.mxu0 0.0
    %35 = vmatpush1.msra.mxu0 0.0
    %36 = vmatprep.subr.mxu0 0.0
    %37 = vmatpush1.msra.mxu0 0.0
    %38 = vmatprep.subr.mxu0 0.0
    %39 = vmatpush1.msra.mxu0 0.0
    %40 = vmatprep.subr.mxu0 0.0
    %41 = vmatpush1.msra.mxu0 0.0
    %42 = vmatprep.subr.mxu0 0.0
    %43 = vmatpush1.msra.mxu0 0.0
    %44 = vmatprep.subr.mxu0 0.0
    %45 = vmatpush1.msra.mxu0 0.0
    %46 = vmatprep.subr.mxu0 0.0
    %47 = vmatpush1.msra.mxu0 0.0
    %48 = vmatprep.subr.mxu0 0.0
    %49 = vmatpush1.msra.mxu0 0.0
    %50 = vmatprep.subr.mxu0 0.0
    %51 = vmatpush1.msra.mxu0 0.0
    %52 = vmatprep.subr.mxu0 0.0
    %53 = vmatpush1.msra.mxu0 0.0
    %54 = vmatprep.subr.mxu0 0.0
    %55 = vmatpush1.msra.mxu0 0.0
    %56 = vmatprep.subr.mxu0 0.0
    %57 = vmatpush1.msra.mxu0 0.0
    %58 = vmatprep.subr.mxu0 0.0
    %59 = vmatpush1.msra.mxu0 0.0
    %60 = vmatprep.subr.mxu0 0.0
    %61 = vmatpush1.msra.mxu0 0.0
    %62 = vmatprep.subr.mxu0 0.0
    %63 = vmatpush1.msra.mxu0 0.0
    %64 = vmatprep.subr.mxu0 0.0
    %65 = vmatpush1.msra.mxu0 0.0
    %66 = vmatprep.subr.mxu0 0.0
    %67 = vmatpush1.msra.mxu0 0.0
    %68 = vmatprep.subr.mxu0 0.0
    %69 = vmatpush1.msra.mxu0 0.0
    %70 = vmatprep.subr.mxu0 0.0
    %71 = vmatpush1.msra.mxu0 0.0
    %72 = vmatprep.subr.mxu0 0.0
    %73 = vmatpush1.msra.mxu0 0.0
    %74 = vmatprep.subr.mxu0 0.0
    %75 = vmatpush1.msra.mxu0 0.0
    %76 = vmatprep.subr.mxu0 0.0
    %77 = vmatpush1.msra.mxu0 0.0
    %78 = vmatprep.subr.mxu0 0.0
    %79 = vmatpush1.msra.mxu0 0.0
    %80 = vmatprep.subr.mxu0 0.0
    %81 = vmatpush1.msra.mxu0 0.0
    %82 = vmatprep.subr.mxu0 0.0
    %83 = vmatpush1.msra.mxu0 0.0
    %84 = vmatprep.subr.mxu0 0.0
    %85 = vmatpush1.msra.mxu0 0.0
    %86 = vmatprep.subr.mxu0 0.0
    %87 = vmatpush1.msra.mxu0 0.0
    %88 = vmatprep.subr.mxu0 0.0
    %89 = vmatpush1.msra.mxu0 0.0
    %90 = vmatprep.subr.mxu0 0.0
    %91 = vmatpush1.msra.mxu0 0.0
    %92 = vmatprep.mubr.f32.mxu0 0.0
    %93 = vmatmul.mubr.f32.gmra.mrb[0].mxu0 %v26
    %v94 = vpop.f32.mrb[0].mxu0
    %v95 = vadd.f32 0.0, %v94
    %v96 = vpop.f32.mrb[0].mxu0
    %97 = vdwg.mxu0
    %vm98 = vcmask 31744
    %v99 = vsel %vm98, %v95, 0.0
    %v100 = vrot.slane %v99, 4
    %v101 = vadd.f32 %v99, %v100
    %v102 = vrot.slane %v101, 2
    %v103 = vadd.f32 %v101, %v102
    %v104 = vrot.slane %v103, 1
    %v105 = vadd.f32 %v103, %v104
    %v106 = vrcp.pop 8.0
    %v107 = vmul.f32 %v105, %v106
    %v108 = vsub.f32 %v95, %v107
    %v109 = vmul.f32 %v108, %v108
    %v110 = vsel %vm98, %v109, 0.0
    %v111 = vrot.slane %v110, 4
    %v112 = vadd.f32 %v110, %v111
    %v113 = vrot.slane %v112, 2
    %v114 = vadd.f32 %v112, %v113
    %v115 = vrot.slane %v114, 1
    %v116 = vadd.f32 %v114, %v115
    %v117 = vmul.f32 %v116, %v106
    %v118 = vld [vmem:[%s2] sm:$0x1]
    %v119 = vld [vmem:[%s2 + $0x1] sm:$0x1]
    %v120 = vadd.f32 %v117, 1e-05
    %v121 = vrsqrt.pop %v120
    %v122 = vmul.f32 %v108, %v121
    %v123 = vlaneseq
    %v124 = vshrl.u32 %v123, 7
    %v125 = vsub.s32 0, %v124
    %v126 = vrot.slane %v118, %v125
    %v127 = vmul.f32 %v122, %v126
    %v128 = vlaneseq
    %v129 = vshrl.u32 %v128, 7
    %v130 = vsub.s32 0, %v129
    %v131 = vrot.slane %v119, %v130
    %v132 = vadd.f32 %v127, %v131
    %v133 = vld [vmem:[%s3] sm:$0xf]
    %v134 = vld [vmem:[%s4] sm:$0x1]
    %v136 = vlaneseq
    %v137 = vshrl.u32 %v136, 7
    %v138 = vsub.s32 0, %v137
    %v139 = vrot.slane %v134, %v138
    %v142 = vsel %vm98, %v132, 0
    %vm144 = vcmask 1043456
    %v146 = vsel %vm144, %v133, 0
    %148 = vmatprep.subr.mxu0 0.0
    %149 = vmatpush1.msra.mxu0 %v146
    %150 = vmatprep.subr.mxu0 0.0
    %151 = vmatpush1.msra.mxu0 0.0
    %152 = vmatprep.subr.mxu0 0.0
    %153 = vmatpush1.msra.mxu0 0.0
    %154 = vmatprep.subr.mxu0 0.0
    %155 = vmatpush1.msra.mxu0 0.0
    %156 = vmatprep.subr.mxu0 0.0
    %157 = vmatpush1.msra.mxu0 0.0
    %158 = vmatprep.subr.mxu0 0.0
    %159 = vmatpush1.msra.mxu0 0.0
    %160 = vmatprep.subr.mxu0 0.0
    %161 = vmatpush1.msra.mxu0 0.0
    %162 = vmatprep.subr.mxu0 0.0
    %163 = vmatpush1.msra.mxu0 0.0
    %164 = vmatprep.subr.mxu0 0.0
    %165 = vmatpush1.msra.mxu0 0.0
    %166 = vmatprep.subr.mxu0 0.0
    %167 = vmatpush1.msra.mxu0 0.0
    %168 = vmatprep.subr.mxu0 0.0
    %169 = vmatpush1.msra.mxu0 0.0
    %170 = vmatprep.subr.mxu0 0.0
    %171 = vmatpush1.msra.mxu0 0.0
    %172 = vmatprep.subr.mxu0 0.0
    %173 = vmatpush1.msra.mxu0 0.0
    %174 = vmatprep.subr.mxu0 0.0
    %175 = vmatpush1.msra.mxu0 0.0
    %176 = vmatprep.subr.mxu0 0.0
    %177 = vmatpush1.msra.mxu0 0.0
    %178 = vmatprep.subr.mxu0 0.0
    %179 = vmatpush1.msra.mxu0 0.0
    %180 = vmatprep.subr.mxu0 0.0
    %181 = vmatpush1.msra.mxu0 0.0
    %182 = vmatprep.subr.mxu0 0.0
    %183 = vmatpush1.msra.mxu0 0.0
    %184 = vmatprep.subr.mxu0 0.0
    %185 = vmatpush1.msra.mxu0 0.0
    %186 = vmatprep.subr.mxu0 0.0
    %187 = vmatpush1.msra.mxu0 0.0
    %188 = vmatprep.subr.mxu0 0.0
    %189 = vmatpush1.msra.mxu0 0.0
    %190 = vmatprep.subr.mxu0 0.0
    %191 = vmatpush1.msra.mxu0 0.0
    %192 = vmatprep.subr.mxu0 0.0
    %193 = vmatpush1.msra.mxu0 0.0
    %194 = vmatprep.subr.mxu0 0.0
    %195 = vmatpush1.msra.mxu0 0.0
    %196 = vmatprep.subr.mxu0 0.0
    %197 = vmatpush1.msra.mxu0 0.0
    %198 = vmatprep.subr.mxu0 0.0
    %199 = vmatpush1.msra.mxu0 0.0
    %200 = vmatprep.subr.mxu0 0.0
    %201 = vmatpush1.msra.mxu0 0.0
    %202 = vmatprep.subr.mxu0 0.0
    %203 = vmatpush1.msra.mxu0 0.0
    %204 = vmatprep.subr.mxu0 0.0
    %205 = vmatpush1.msra.mxu0 0.0
    %206 = vmatprep.subr.mxu0 0.0
    %207 = vmatpush1.msra.mxu0 0.0
    %208 = vmatprep.subr.mxu0 0.0
    %209 = vmatpush1.msra.mxu0 0.0
    %210 = vmatprep.subr.mxu0 0.0
    %211 = vmatpush1.msra.mxu0 0.0
    %212 = vmatprep.mubr.f32.mxu0 0.0
    %213 = vmatmul.mubr.f32.gmra.mrb[0].mxu0 %v142
    %v214 = vpop.f32.mrb[0].mxu0
    %v215 = vadd.f32 %v139, %v214
    %v216 = vpop.f32.mrb[0].mxu0
    %217 = vdwg.mxu0
    %vm218 = vcmask 244736
    %219 = vst.msk [vmem:[#allocation2] sm:$0xff] %vm218, %v215
    // Predicated region
    $region22: #{tpu_custom_call.1} parent=1 // pred_check
      _
    $region23: #{tpu_custom_call.1} parent=1 // pred_check_branch
      %221 = sbr.rel (0) target = $region25
    $region24: #{tpu_custom_call.1} parent=1 // pred_region
      %s223 = ssub.s32 128, 128
      %224 = vsyncadd [#allocation3], %s223
      %s226 = sshll.u32 [#allocation2], 4
      %s227 = int_to_ptr.vmem [resolvable:$true] %s226
      %229 = dma.vmem_to_hbm [thread:$0]  %s227, 128, %s5, [#allocation3]
    $region25: #{tpu_custom_call.1} parent=1 // pred_fallthru
      _
    // Predicated region
    $region26: #{tpu_custom_call.1} parent=1 // pred_check
      _
    $region27: #{tpu_custom_call.1} parent=1 // pred_check_branch
      %231 = sbr.rel (0) target = $region29
    $region28: #{tpu_custom_call.1} parent=1 // pred_region
      %232 = dma.done [#allocation3], 128
    $region29: #{tpu_custom_call.1} parent=1 // pred_fallthru
      _
    %233 = vsyncpa [#allocation3], 1

</llo_original>
